<compile_context>
chip_gen: v7x
topology: tpu7x:2x2x1
jax: 0.10.0
libtpu: 0.0.40
codegen_flags: <defaults>
</compile_context>

<pallas_src>
import functools
import math

import jax
import jax.numpy as jnp
from jax.experimental import pallas as pl
from jax.experimental.pallas import tpu as pltpu


def _round_up(x, m):
    return ((x + m - 1) // m) * m


def _ffn_kernel(x_ref, wgu_ref, wd_ref, o_ref, acc_ref, *, tn):
    # x_ref:   (tm, dim)        token tile (native dtype, no upcast)
    # wgu_ref: (dim, 2*tn)      fused [gate_tile | up_tile] weight block
    # wd_ref:  (tn, dim)        down_proj weight block for this hidden tile
    # o_ref:   (tm, dim)        output tile (written on last hidden step)
    # acc_ref: (tm, dim) f32    resident accumulator across the hidden axis
    j = pl.program_id(1)

    @pl.when(j == 0)
    def _():
        acc_ref[...] = jnp.zeros_like(acc_ref)

    # Fused gate+up projection: one MXU op, operands stay in native dtype,
    # accumulation in f32.
    gu = jnp.dot(x_ref[...], wgu_ref[...], preferred_element_type=jnp.float32)
    gate = gu[:, :tn]
    up = gu[:, tn:]

    # exact (erf-based) GELU — matches torch.nn.functional.gelu default
    inv_sqrt2 = jnp.float32(0.7071067811865476)
    gelu_up = 0.5 * up * (1.0 + jax.lax.erf(up * inv_sqrt2))
    activated = (gate * gelu_up).astype(wd_ref.dtype)

    # Partial down-projection for this hidden tile, accumulated in f32.
    acc_ref[...] += jnp.dot(activated, wd_ref[...],
                            preferred_element_type=jnp.float32)

    @pl.when(j == pl.num_programs(1) - 1)
    def _():
        o_ref[...] = acc_ref[...].astype(o_ref.dtype)


def llama_feedforward(x, wg_t, wu_t, wd_t, *, tm=256, tn=512):
    """down_proj( gate_proj(x) * gelu(up_proj(x)) ); dropout = identity (eval).

    x: (..., dim).  Weights pre-transposed to (in, out).
    tm: token tile (rows fed to the MXU per step), tn: hidden tile.
    Ragged M / hidden are handled by zero-padding (masking-free, exact).
    """
    orig_shape = x.shape
    dim = orig_shape[-1]
    hidden = wg_t.shape[1]

    x2d = x.reshape(-1, dim)
    M = x2d.shape[0]

    # Effective tiles: keep them large, shrink only to the (padded) problem size.
    tm_eff = min(tm, _round_up(M, 8))            # sublane-aligned
    tn_eff = min(tn, _round_up(hidden, 128))     # lane-aligned (multiple of 128)

    M_p = _round_up(M, tm_eff)
    hidden_p = _round_up(hidden, tn_eff)

    if M_p != M:
        x2d = jnp.pad(x2d, ((0, M_p - M), (0, 0)))
    if hidden_p != hidden:
        ph = hidden_p - hidden
        wg_t = jnp.pad(wg_t, ((0, 0), (0, ph)))   # zero cols -> gelu(0)*gate = 0
        wu_t = jnp.pad(wu_t, ((0, 0), (0, ph)))
        wd_t = jnp.pad(wd_t, ((0, ph), (0, 0)))   # zero rows -> contribute 0

    nj = hidden_p // tn_eff
    # Interleave per-tile so fused tile j = [wg columns of tile j | wu columns of tile j].
    wgu = jnp.concatenate(
        [wg_t.reshape(dim, nj, tn_eff), wu_t.reshape(dim, nj, tn_eff)],
        axis=2,
    ).reshape(dim, nj * 2 * tn_eff)

    # Explicit VMEM budget: double-buffered weight tiles + x/out tiles + f32 acc.
    wbytes = wgu.dtype.itemsize
    xbytes = x2d.dtype.itemsize
    working = (2 * (dim * 2 * tn_eff + tn_eff * dim) * wbytes   # weight double-buffers
               + 2 * tm_eff * dim * xbytes                      # x double-buffer
               + 2 * tm_eff * dim * xbytes                      # out double-buffer
               + tm_eff * dim * 4)                              # f32 accumulator
    vmem_limit = int(min(max(2 * working, 8 << 20), 64 << 20))  # headroom, v7x-safe cap

    kernel = functools.partial(_ffn_kernel, tn=tn_eff)

    out = pl.pallas_call(
        kernel,
        out_shape=jax.ShapeDtypeStruct((M_p, dim), x.dtype),
        grid_spec=pltpu.PrefetchScalarGridSpec(
            num_scalar_prefetch=0,
            grid=(M_p // tm_eff, nj),               # (token tiles, hidden tiles)
            in_specs=[
                pl.BlockSpec((tm_eff, dim), lambda i, j: (i, 0)),
                pl.BlockSpec((dim, 2 * tn_eff), lambda i, j: (0, j)),
                pl.BlockSpec((tn_eff, dim), lambda i, j: (j, 0)),
            ],
            out_specs=pl.BlockSpec((tm_eff, dim), lambda i, j: (i, 0)),
            scratch_shapes=[pltpu.VMEM((tm_eff, dim), jnp.float32)],
        ),
        compiler_params=pltpu.CompilerParams(
            dimension_semantics=("parallel", "arbitrary"),
            vmem_limit_bytes=vmem_limit,
        ),
    )(x2d, wgu, wd_t)

    if M_p != M:
        out = out[:M]
    return out.reshape(orig_shape)


def init_params(key, dim, hidden_dim, dtype=jnp.float32):
    """nn.Linear default init U(-1/sqrt(fan_in), 1/sqrt(fan_in)), stored as (in, out)."""
    kg, ku, kd = jax.random.split(key, 3)
    bg = 1.0 / math.sqrt(dim)
    bd = 1.0 / math.sqrt(hidden_dim)
    wg_t = jax.random.uniform(kg, (dim, hidden_dim), jnp.float32, -bg, bg).astype(dtype)
    wu_t = jax.random.uniform(ku, (dim, hidden_dim), jnp.float32, -bg, bg).astype(dtype)
    wd_t = jax.random.uniform(kd, (hidden_dim, dim), jnp.float32, -bd, bd).astype(dtype)
    return wg_t, wu_t, wd_t


def reference(x, wg_t, wu_t, wd_t):
    x32 = x.astype(jnp.float32)
    gate = x32 @ wg_t.astype(jnp.float32)
    up = x32 @ wu_t.astype(jnp.float32)
    gelu_up = 0.5 * up * (1.0 + jax.lax.erf(up / jnp.sqrt(2.0)))
    return ((gate * gelu_up) @ wd_t.astype(jnp.float32)).astype(x.dtype)


if __name__ == "__main__":
    key = jax.random.PRNGKey(0)
    k_x, k_w = jax.random.split(key)

    batch, seq, dim = 2, 8, 32
    hidden_dim = 4 * dim  # 128

    x = jax.random.normal(k_x, (batch, seq, dim), jnp.float32)
    wg_t, wu_t, wd_t = init_params(k_w, dim, hidden_dim, dtype=jnp.float32)

    out = llama_feedforward(x, wg_t, wu_t, wd_t)
    out = jax.block_until_ready(out)

    ref = reference(x, wg_t, wu_t, wd_t)
    assert out.shape == x.shape
    assert jnp.allclose(out, ref, atol=1e-4, rtol=1e-4), "mismatch vs reference"

    print("KERNEL_OK")
</pallas_src>

<mosaic_0001>
module attributes {stable_mosaic.version = 11 : i64} {
  func.func @_ffn_kernel(%arg0: i32, %arg1: i32, %arg2: memref<16x32xf32, #tpu.memory_space<vmem>>, %arg3: memref<32x256xf32, #tpu.memory_space<vmem>>, %arg4: memref<128x32xf32, #tpu.memory_space<vmem>>, %arg5: memref<16x32xf32, #tpu.memory_space<vmem>>, %arg6: memref<16x32xf32, #tpu.memory_space<vmem>>) attributes {dimension_semantics = [#tpu.dimension_semantics<parallel>, #tpu.dimension_semantics<arbitrary>], iteration_bounds = array<i64: 1, 1>, scalar_prefetch = 0 : i64, scratch_operands = 1 : i64, tpu.core_type = #tpu.core_type<tc>, window_params = [{transform_indices = @transform_0, window_bounds = array<i64: 16, 32>}, {transform_indices = @transform_1, window_bounds = array<i64: 32, 256>}, {transform_indices = @transform_2, window_bounds = array<i64: 128, 32>}, {transform_indices = @transform_3, window_bounds = array<i64: 16, 32>}]} {
    %c0_i32 = arith.constant 0 : i32
    %0 = arith.cmpi eq, %arg1, %c0_i32 : i32
    %1 = arith.extui %0 : i1 to i32
    %c0_i32_0 = arith.constant 0 : i32
    %2 = arith.cmpi ne, %1, %c0_i32_0 : i32
    scf.if %2 {
      %cst_16 = arith.constant 0.000000e+00 : f32
      %25 = vector.broadcast %cst_16 : f32 to vector<16x32xf32>
      %c0_17 = arith.constant 0 : index
      %c0_18 = arith.constant 0 : index
      %26 = vector.load %arg6[%c0_17, %c0_18] : memref<16x32xf32, #tpu.memory_space<vmem>>, vector<16x32xf32>
      tpu.vector_store %arg6[%c0_17, %c0_18], %25 {strides = array<i32>} : memref<16x32xf32, #tpu.memory_space<vmem>>, vector<16x32xf32>,
    } else {
    }
    %c0 = arith.constant 0 : index
    %c0_1 = arith.constant 0 : index
    %3 = vector.load %arg2[%c0, %c0_1] : memref<16x32xf32, #tpu.memory_space<vmem>>, vector<16x32xf32>
    %c0_2 = arith.constant 0 : index
    %c0_3 = arith.constant 0 : index
    %4 = vector.load %arg3[%c0_2, %c0_3] : memref<32x256xf32, #tpu.memory_space<vmem>>, vector<32x256xf32>
    %cst = arith.constant dense<0.000000e+00> : vector<16x256xf32>
    %5 = tpu.matmul %3, %4, %cst {dimension_numbers = #tpu.dot_dimension_numbers<[1], [0], [0], [1], [0, 0, 1, 1], [], []>} : vector<16x32xf32>, vector<32x256xf32>, vector<16x256xf32> -> vector<16x256xf32>
    %6 = vector.extract_strided_slice %5 {offsets = [0, 0], sizes = [16, 128], strides = [1, 1]} : vector<16x256xf32> to vector<16x128xf32>
    %7 = vector.extract_strided_slice %5 {offsets = [0, 128], sizes = [16, 128], strides = [1, 1]} : vector<16x256xf32> to vector<16x128xf32>
    %cst_4 = arith.constant 5.000000e-01 : f32
    %8 = vector.broadcast %cst_4 : f32 to vector<16x128xf32>
    %9 = arith.mulf %8, %7 : vector<16x128xf32>
    %cst_5 = arith.constant 0.707106769 : f32
    %10 = vector.broadcast %cst_5 : f32 to vector<16x128xf32>
    %11 = arith.mulf %7, %10 : vector<16x128xf32>
    %12 = math.erf %11 : vector<16x128xf32>
    %cst_6 = arith.constant 1.000000e+00 : f32
    %13 = vector.broadcast %cst_6 : f32 to vector<16x128xf32>
    %14 = arith.addf %13, %12 : vector<16x128xf32>
    %15 = arith.mulf %9, %14 : vector<16x128xf32>
    %16 = arith.mulf %6, %15 : vector<16x128xf32>
    %c0_7 = arith.constant 0 : index
    %c0_8 = arith.constant 0 : index
    %17 = vector.load %arg6[%c0_7, %c0_8] : memref<16x32xf32, #tpu.memory_space<vmem>>, vector<16x32xf32>
    %c0_9 = arith.constant 0 : index
    %c0_10 = arith.constant 0 : index
    %18 = vector.load %arg4[%c0_9, %c0_10] : memref<128x32xf32, #tpu.memory_space<vmem>>, vector<128x32xf32>
    %cst_11 = arith.constant dense<0.000000e+00> : vector<16x32xf32>
    %19 = tpu.matmul %16, %18, %cst_11 {dimension_numbers = #tpu.dot_dimension_numbers<[1], [0], [0], [1], [0, 0, 1, 1], [], []>} : vector<16x128xf32>, vector<128x32xf32>, vector<16x32xf32> -> vector<16x32xf32>
    %20 = arith.addf %17, %19 : vector<16x32xf32>
    %c0_12 = arith.constant 0 : index
    %c0_13 = arith.constant 0 : index
    %21 = vector.load %arg6[%c0_12, %c0_13] : memref<16x32xf32, #tpu.memory_space<vmem>>, vector<16x32xf32>
    tpu.vector_store %arg6[%c0_12, %c0_13], %20 {strides = array<i32>} : memref<16x32xf32, #tpu.memory_space<vmem>>, vector<16x32xf32>,
    %c0_i32_14 = arith.constant 0 : i32
    %22 = arith.cmpi eq, %arg1, %c0_i32_14 : i32
    %23 = arith.extui %22 : i1 to i32
    %c0_i32_15 = arith.constant 0 : i32
    %24 = arith.cmpi ne, %23, %c0_i32_15 : i32
    scf.if %24 {
      %c0_16 = arith.constant 0 : index
      %c0_17 = arith.constant 0 : index
      %25 = vector.load %arg6[%c0_16, %c0_17] : memref<16x32xf32, #tpu.memory_space<vmem>>, vector<16x32xf32>
      %c0_18 = arith.constant 0 : index
      %c0_19 = arith.constant 0 : index
      %26 = vector.load %arg5[%c0_18, %c0_19] : memref<16x32xf32, #tpu.memory_space<vmem>>, vector<16x32xf32>
      tpu.vector_store %arg5[%c0_18, %c0_19], %25 {strides = array<i32>} : memref<16x32xf32, #tpu.memory_space<vmem>>, vector<16x32xf32>,
    } else {
    }
    return
  }
  func.func @transform_0(%arg0: i32, %arg1: i32) -> (i32, i32) {
    %c0_i32 = arith.constant 0 : i32
    %c0_i32_0 = arith.constant 0 : i32
    return %arg0, %c0_i32 : i32, i32
  }
  func.func @transform_1(%arg0: i32, %arg1: i32) -> (i32, i32) {
    %c0_i32 = arith.constant 0 : i32
    %c0_i32_0 = arith.constant 0 : i32
    return %c0_i32, %arg1 : i32, i32
  }
  func.func @transform_2(%arg0: i32, %arg1: i32) -> (i32, i32) {
    %c0_i32 = arith.constant 0 : i32
    %c0_i32_0 = arith.constant 0 : i32
    return %arg1, %c0_i32 : i32, i32
  }
  func.func @transform_3(%arg0: i32, %arg1: i32) -> (i32, i32) {
    %c0_i32 = arith.constant 0 : i32
    %c0_i32_0 = arith.constant 0 : i32
    return %arg0, %c0_i32 : i32, i32
  }
}

</mosaic_0001>

<llo_original>
// kernel: tpu_custom_call.1
$region0: #{tpu_custom_call.1}
  #allocation0 [shape = 'u32[]', space=smem, size = 0x4, offset = 0x4, fixed_abs, tag = 'smem constant byte address 0x4 - core index']
  #allocation1 [shape = 'u32[144,128]{1,0:T(1,128)}', space=vmem, size = 0x12000, scoped, tag = 'internal scratch']
  #allocation2 [shape = 'f32[16,32]{1,0:T(8,128)}', space=vmem, size = 0x2000, scoped, tag = 'scratch operand']
  %s0 = inlined_call_operand.vmem [shape: f32[16,32], index: 0, kind: input, shape index: {}]
  %s1 = inlined_call_operand.vmem [shape: f32[32,256], index: 1, kind: input, shape index: {}]
  %s2 = inlined_call_operand.vmem [shape: f32[128,32], index: 2, kind: input, shape index: {}]
  %s3 = inlined_call_operand.hbm [shape: f32[16,32], index: 3, kind: output, shape index: {}]
  %s4 = sld [smem:[#allocation0]]
  $region30: #{tpu_custom_call.1} parent=0
    _
  %s6 = ssub.s32 1, %s4
  %s7 = scalar_select 0, %s6, %s4
  $region1: #{tpu_custom_call.1} parent=0
    #allocation3 [shape = 'u8[8192]{0}', space=vmem, size = 0x2000, scoped, tag = 'output window, operand 0, single buffered']
    #allocation4 [shape = 's32[1]{0}', space=sflag, size = 0x4, scoped, tag = 'scoped memory for tpu_custom_call.1']
    %8 = vsyncpa [#allocation4], 0
    // Predicated region
    $region2: #{tpu_custom_call.1} parent=1 // pred_check
      _
    $region3: #{tpu_custom_call.1} parent=1 // pred_check_branch
      %10 = sbr.rel (0) target = $region5
    $region4: #{tpu_custom_call.1} parent=1 // pred_region
      _
    $region5: #{tpu_custom_call.1} parent=1 // pred_fallthru
      _
    // Predicated region
    $region6: #{tpu_custom_call.1} parent=1 // pred_check
      _
    $region7: #{tpu_custom_call.1} parent=1 // pred_check_branch
      %12 = sbr.rel (0) target = $region9
    $region8: #{tpu_custom_call.1} parent=1 // pred_region
      _
    $region9: #{tpu_custom_call.1} parent=1 // pred_fallthru
      _
    // Predicated region
    $region10: #{tpu_custom_call.1} parent=1 // pred_check
      _
    $region11: #{tpu_custom_call.1} parent=1 // pred_check_branch
      %14 = sbr.rel (0) target = $region13
    $region12: #{tpu_custom_call.1} parent=1 // pred_region
      _
    $region13: #{tpu_custom_call.1} parent=1 // pred_fallthru
      _
    %p15 = scmp.eq.s32.totalorder 0, 0
    // Predicated region
    $region14: #{tpu_custom_call.1} parent=1 // pred_check
      %p16 = pneg %p15
    $region15: #{tpu_custom_call.1} parent=1 // pred_check_branch
      %18 = sbr.rel (%p16) target = $region17
    $region16: #{tpu_custom_call.1} parent=1 // pred_region
      %vm19 = vcmask 261120
      %20 = vst.msk [vmem:[#allocation2] sm:$0xff] %vm19, 0.0
      %21 = vst.msk [vmem:[#allocation2 + $0x8] sm:$0xff] %vm19, 0.0
    $region17: #{tpu_custom_call.1} parent=1 // pred_fallthru
      _
    %v22 = vld [vmem:[%s0] sm:$0xff]
    %v23 = vld [vmem:[%s0 + $0x8] sm:$0xff]
    %v24 = vld [vmem:[%s1] sm:$0xff]
    %v25 = vld [vmem:[%s1 + $0x8] sm:$0xff]
    %v26 = vld [vmem:[%s1 + $0x10] sm:$0xff]
    %v27 = vld [vmem:[%s1 + $0x18] sm:$0xff]
    %v28 = vld [vmem:[%s1 + $0x20] sm:$0xff]
    %v29 = vld [vmem:[%s1 + $0x28] sm:$0xff]
    %v30 = vld [vmem:[%s1 + $0x30] sm:$0xff]
    %v31 = vld [vmem:[%s1 + $0x38] sm:$0xff]
    %vm32 = vcmask 261120
    %v34 = vsel %vm32, %v22, 0
    %v37 = vsel %vm32, %v23, 0
    %39 = vmatprep.subr.mxu0 %v25
    %40 = vmatpush1.msra.mxu0 %v24
    %41 = vmatprep.subr.mxu0 %v27
    %42 = vmatpush1.msra.mxu0 %v26
    %43 = vmatprep.subr.mxu0 %v29
    %44 = vmatpush1.msra.mxu0 %v28
    %45 = vmatprep.subr.mxu0 %v31
    %46 = vmatpush1.msra.mxu0 %v30
    %47 = vmatprep.subr.mxu0 0.0
    %48 = vmatpush1.msra.mxu0 0.0
    %49 = vmatprep.subr.mxu0 0.0
    %50 = vmatpush1.msra.mxu0 0.0
    %51 = vmatprep.subr.mxu0 0.0
    %52 = vmatpush1.msra.mxu0 0.0
    %53 = vmatprep.subr.mxu0 0.0
    %54 = vmatpush1.msra.mxu0 0.0
    %55 = vmatprep.subr.mxu0 0.0
    %56 = vmatpush1.msra.mxu0 0.0
    %57 = vmatprep.subr.mxu0 0.0
    %58 = vmatpush1.msra.mxu0 0.0
    %59 = vmatprep.subr.mxu0 0.0
    %60 = vmatpush1.msra.mxu0 0.0
    %61 = vmatprep.subr.mxu0 0.0
    %62 = vmatpush1.msra.mxu0 0.0
    %63 = vmatprep.subr.mxu0 0.0
    %64 = vmatpush1.msra.mxu0 0.0
    %65 = vmatprep.subr.mxu0 0.0
    %66 = vmatpush1.msra.mxu0 0.0
    %67 = vmatprep.subr.mxu0 0.0
    %68 = vmatpush1.msra.mxu0 0.0
    %69 = vmatprep.subr.mxu0 0.0
    %70 = vmatpush1.msra.mxu0 0.0
    %71 = vmatprep.subr.mxu0 0.0
    %72 = vmatpush1.msra.mxu0 0.0
    %73 = vmatprep.subr.mxu0 0.0
    %74 = vmatpush1.msra.mxu0 0.0
    %75 = vmatprep.subr.mxu0 0.0
    %76 = vmatpush1.msra.mxu0 0.0
    %77 = vmatprep.subr.mxu0 0.0
    %78 = vmatpush1.msra.mxu0 0.0
    %79 = vmatprep.subr.mxu0 0.0
    %80 = vmatpush1.msra.mxu0 0.0
    %81 = vmatprep.subr.mxu0 0.0
    %82 = vmatpush1.msra.mxu0 0.0
    %83 = vmatprep.subr.mxu0 0.0
    %84 = vmatpush1.msra.mxu0 0.0
    %85 = vmatprep.subr.mxu0 0.0
    %86 = vmatpush1.msra.mxu0 0.0
    %87 = vmatprep.subr.mxu0 0.0
    %88 = vmatpush1.msra.mxu0 0.0
    %89 = vmatprep.subr.mxu0 0.0
    %90 = vmatpush1.msra.mxu0 0.0
    %91 = vmatprep.subr.mxu0 0.0
    %92 = vmatpush1.msra.mxu0 0.0
    %93 = vmatprep.subr.mxu0 0.0
    %94 = vmatpush1.msra.mxu0 0.0
    %95 = vmatprep.subr.mxu0 0.0
    %96 = vmatpush1.msra.mxu0 0.0
    %97 = vmatprep.subr.mxu0 0.0
    %98 = vmatpush1.msra.mxu0 0.0
    %99 = vmatprep.subr.mxu0 0.0
    %100 = vmatpush1.msra.mxu0 0.0
    %101 = vmatprep.subr.mxu0 0.0
    %102 = vmatpush1.msra.mxu0 0.0
    %103 = vmatprep.mubr.f32.mxu0 0.0
    %104 = vmatmul.mubr.f32.gmra.mrb[0].mxu0 %v34
    %v105 = vpop.f32.mrb[0].mxu0
    %v106 = vadd.f32 0.0, %v105
    %v107 = vpop.f32.mrb[0].mxu0
    %v108 = vadd.f32 0.0, %v107
    %109 = vmatprep.mubr.f32.mxu0 0.0
    %110 = vmatmul.mubr.f32.gmra.mrb[0].mxu0 %v37
    %v111 = vpop.f32.mrb[0].mxu0
    %v112 = vadd.f32 0.0, %v111
    %v113 = vpop.f32.mrb[0].mxu0
    %v114 = vadd.f32 0.0, %v113
    %115 = vdwg.mxu0
    %v116 = vmul.f32 %v108, 0.5
    %v117 = vmul.f32 %v114, 0.5
    %v118 = vmul.f32 %v108, 0.70710677
    %v119 = vmul.f32 %v114, 0.70710677
    %v120 = verf.f32.pop %v118
    %v121 = verf.f32.pop %v119
    %v122 = vadd.f32 %v120, 1.0
    %v123 = vadd.f32 %v121, 1.0
    %v124 = vmul.f32 %v116, %v122
    %v125 = vmul.f32 %v117, %v123
    %v126 = vmul.f32 %v106, %v124
    %v127 = vmul.f32 %v112, %v125
    %v128 = vld [vmem:[#allocation2] sm:$0xff]
    %v129 = vld [vmem:[#allocation2 + $0x8] sm:$0xff]
    %v130 = vld [vmem:[%s2] sm:$0xff]
    %v131 = vld [vmem:[%s2 + $0x8] sm:$0xff]
    %v132 = vld [vmem:[%s2 + $0x10] sm:$0xff]
    %v133 = vld [vmem:[%s2 + $0x18] sm:$0xff]
    %v134 = vld [vmem:[%s2 + $0x20] sm:$0xff]
    %v135 = vld [vmem:[%s2 + $0x28] sm:$0xff]
    %v136 = vld [vmem:[%s2 + $0x30] sm:$0xff]
    %v137 = vld [vmem:[%s2 + $0x38] sm:$0xff]
    %v138 = vld [vmem:[%s2 + $0x40] sm:$0xff]
    %v139 = vld [vmem:[%s2 + $0x48] sm:$0xff]
    %v140 = vld [vmem:[%s2 + $0x50] sm:$0xff]
    %v141 = vld [vmem:[%s2 + $0x58] sm:$0xff]
    %v142 = vld [vmem:[%s2 + $0x60] sm:$0xff]
    %v143 = vld [vmem:[%s2 + $0x68] sm:$0xff]
    %v144 = vld [vmem:[%s2 + $0x70] sm:$0xff]
    %v145 = vld [vmem:[%s2 + $0x78] sm:$0xff]
    %146 = vmatprep.subr.mxu0 0.0
    %147 = vmatpush1.msra.mxu0 %v130
    %148 = vmatprep.subr.mxu0 0.0
    %149 = vmatpush1.msra.mxu0 %v131
    %150 = vmatprep.subr.mxu0 0.0
    %151 = vmatpush1.msra.mxu0 %v132
    %152 = vmatprep.subr.mxu0 0.0
    %153 = vmatpush1.msra.mxu0 %v133
    %154 = vmatprep.subr.mxu0 0.0
    %155 = vmatpush1.msra.mxu0 %v134
    %156 = vmatprep.subr.mxu0 0.0
    %157 = vmatpush1.msra.mxu0 %v135
    %158 = vmatprep.subr.mxu0 0.0
    %159 = vmatpush1.msra.mxu0 %v136
    %160 = vmatprep.subr.mxu0 0.0
    %161 = vmatpush1.msra.mxu0 %v137
    %162 = vmatprep.subr.mxu0 0.0
    %163 = vmatpush1.msra.mxu0 %v138
    %164 = vmatprep.subr.mxu0 0.0
    %165 = vmatpush1.msra.mxu0 %v139
    %166 = vmatprep.subr.mxu0 0.0
    %167 = vmatpush1.msra.mxu0 %v140
    %168 = vmatprep.subr.mxu0 0.0
    %169 = vmatpush1.msra.mxu0 %v141
    %170 = vmatprep.subr.mxu0 0.0
    %171 = vmatpush1.msra.mxu0 %v142
    %172 = vmatprep.subr.mxu0 0.0
    %173 = vmatpush1.msra.mxu0 %v143
    %174 = vmatprep.subr.mxu0 0.0
    %175 = vmatpush1.msra.mxu0 %v144
    %176 = vmatprep.subr.mxu0 0.0
    %177 = vmatpush1.msra.mxu0 %v145
    %178 = vmatprep.subr.mxu0 0.0
    %179 = vmatpush1.msra.mxu0 0.0
    %180 = vmatprep.subr.mxu0 0.0
    %181 = vmatpush1.msra.mxu0 0.0
    %182 = vmatprep.subr.mxu0 0.0
    %183 = vmatpush1.msra.mxu0 0.0
    %184 = vmatprep.subr.mxu0 0.0
    %185 = vmatpush1.msra.mxu0 0.0
    %186 = vmatprep.subr.mxu0 0.0
    %187 = vmatpush1.msra.mxu0 0.0
    %188 = vmatprep.subr.mxu0 0.0
    %189 = vmatpush1.msra.mxu0 0.0
    %190 = vmatprep.subr.mxu0 0.0
    %191 = vmatpush1.msra.mxu0 0.0
    %192 = vmatprep.subr.mxu0 0.0
    %193 = vmatpush1.msra.mxu0 0.0
    %194 = vmatprep.subr.mxu0 0.0
    %195 = vmatpush1.msra.mxu0 0.0
    %196 = vmatprep.subr.mxu0 0.0
    %197 = vmatpush1.msra.mxu0 0.0
    %198 = vmatprep.subr.mxu0 0.0
    %199 = vmatpush1.msra.mxu0 0.0
    %200 = vmatprep.subr.mxu0 0.0
    %201 = vmatpush1.msra.mxu0 0.0
    %202 = vmatprep.subr.mxu0 0.0
    %203 = vmatpush1.msra.mxu0 0.0
    %204 = vmatprep.subr.mxu0 0.0
    %205 = vmatpush1.msra.mxu0 0.0
    %206 = vmatprep.subr.mxu0 0.0
    %207 = vmatpush1.msra.mxu0 0.0
    %208 = vmatprep.subr.mxu0 0.0
    %209 = vmatpush1.msra.mxu0 0.0
    %210 = vmatprep.mubr.f32.mxu0 0.0
    %211 = vmatmul.mubr.f32.gmra.mrb[0].mxu0 %v126
    %v212 = vpop.f32.mrb[0].mxu0
    %v213 = vadd.f32 0.0, %v212
    %v214 = vpop.f32.mrb[0].mxu0
    %215 = vmatprep.mubr.f32.mxu0 0.0
    %216 = vmatmul.mubr.f32.gmra.mrb[0].mxu0 %v127
    %v217 = vpop.f32.mrb[0].mxu0
    %v218 = vadd.f32 0.0, %v217
    %v219 = vpop.f32.mrb[0].mxu0
    %220 = vdwg.mxu0
    %v221 = vadd.f32 %v128, %v213
    %v222 = vadd.f32 %v129, %v218
    %223 = vst.msk [vmem:[#allocation2] sm:$0xff] %vm32, %v221
    %224 = vst.msk [vmem:[#allocation2 + $0x8] sm:$0xff] %vm32, %v222
    // Predicated region
    $region18: #{tpu_custom_call.1} parent=1 // pred_check
      %p225 = pneg %p15
    $region19: #{tpu_custom_call.1} parent=1 // pred_check_branch
      %227 = sbr.rel (%p225) target = $region21
    $region20: #{tpu_custom_call.1} parent=1 // pred_region
      %v228 = vld [vmem:[#allocation2] sm:$0xff]
      %v229 = vld [vmem:[#allocation2 + $0x8] sm:$0xff]
      %230 = vst.msk [vmem:[#allocation3] sm:$0xff] %vm32, %v228
      %231 = vst.msk [vmem:[#allocation3 + $0x8] sm:$0xff] %vm32, %v229
    $region21: #{tpu_custom_call.1} parent=1 // pred_fallthru
      _
    // Predicated region
    $region22: #{tpu_custom_call.1} parent=1 // pred_check
      _
    $region23: #{tpu_custom_call.1} parent=1 // pred_check_branch
      %233 = sbr.rel (0) target = $region25
    $region24: #{tpu_custom_call.1} parent=1 // pred_region
      %s235 = ssub.s32 256, 256
      %236 = vsyncadd [#allocation4], %s235
      %s237 = sshll.u32 [#allocation3], 4
      %s238 = int_to_ptr.vmem [resolvable:$true] %s237
      %243 = dma.vmem_to_hbm [thread:$0]  %s238, 256, %s3, [#allocation4], 128, 128, 8
    $region25: #{tpu_custom_call.1} parent=1 // pred_fallthru
      _
    // Predicated region
    $region26: #{tpu_custom_call.1} parent=1 // pred_check
      _
    $region27: #{tpu_custom_call.1} parent=1 // pred_check_branch
      %245 = sbr.rel (0) target = $region29
    $region28: #{tpu_custom_call.1} parent=1 // pred_region
      %246 = dma.done [#allocation4], 256
    $region29: #{tpu_custom_call.1} parent=1 // pred_fallthru
      _
    %247 = vsyncpa [#allocation4], 1

</llo_original>
